<compile_context>
chip_gen: v5e
topology: v5e:2x2
jax: 0.10.0
libtpu: 0.0.40
codegen_flags: <defaults>
</compile_context>

<pallas_src>
import functools

import jax
import jax.numpy as jnp
from jax import lax
from jax.experimental import pallas as pl
from jax.experimental.pallas import tpu as pltpu


def _round_up(x: int, m: int) -> int:
    return (x + m - 1) // m * m


def _linear_kernel_nok(x_ref, w_ref, b_ref, o_ref):
    # Fast path: whole reduction dim in one tile. Grid: (i over batch tiles,
    # j over class tiles). x tile: (tm, K), w tile: (tn, K) -> contract last dims.
    acc = lax.dot_general(
        x_ref[...], w_ref[...],
        dimension_numbers=(((1,), (1,)), ((), ())),
        preferred_element_type=jnp.float32,
    )
    o_ref[...] = (acc + b_ref[...]).astype(o_ref.dtype)


def _linear_kernel_k(x_ref, w_ref, b_ref, o_ref, acc_ref):
    # General path. Grid: (i over batch tiles, j over class tiles, k over K tiles).
    k = pl.program_id(2)

    @pl.when(k == 0)
    def _():
        acc_ref[...] = jnp.zeros_like(acc_ref)

    # x tile: (tm, tk), w tile: (tn, tk) -> contract last dims, no transpose.
    acc_ref[...] += lax.dot_general(
        x_ref[...], w_ref[...],
        dimension_numbers=(((1,), (1,)), ((), ())),
        preferred_element_type=jnp.float32,
    )

    @pl.when(k == pl.num_programs(2) - 1)
    def _():
        # Bias (already f32) added exactly once, then cast to output dtype.
        o_ref[...] = (acc_ref[...] + b_ref[...]).astype(o_ref.dtype)


@functools.partial(jax.jit, static_argnames=("tm", "tn", "tk"))
def linear_classifier(x, w, b, *, tm=256, tn=256, tk=512):
    """x: (..., in_dim), w: (n_classes, in_dim), b: (n_classes,) -> (..., n_classes)."""
    *lead, D = x.shape
    C, D2 = w.shape
    assert D == D2, "weight in_dim must match x feature dim"

    # Flatten arbitrary leading dims (nn.Linear semantics).
    x2d = x.reshape(-1, D)
    B = x2d.shape[0]

    # Cap tiles at padded problem size; keep (8, 128) alignment.
    # Default tiles (256, 256, 512) stay well under v7x's 32 MiB scoped VMEM
    # even with double-buffered inputs/outputs.
    tm = min(tm, _round_up(B, 8))
    tn = min(tn, _round_up(C, 128))
    tk = min(tk, _round_up(D, 128))
    Bp = _round_up(B, tm)
    Cp = _round_up(C, tn)   # lane-dense class dim (multiple of 128)
    Dp = _round_up(D, tk)   # aligned reduction dim (zero-padding adds 0 to acc)

    x_p = x2d if (Bp, Dp) == (B, D) else jnp.pad(x2d, ((0, Bp - B), (0, Dp - D)))
    w_p = w if (Cp, Dp) == (C, D) else jnp.pad(w, ((0, Cp - C), (0, Dp - D)))
    b_p = b if Cp == C else jnp.pad(b, (0, Cp - C))
    b_row = b_p.reshape(1, Cp).astype(jnp.float32)   # cast once, not per tile

    kt = Dp // tk
    dtype_bytes = jnp.dtype(x.dtype).itemsize
    cost = pl.CostEstimate(
        flops=2 * Bp * Cp * Dp,
        transcendentals=0,
        bytes_accessed=(Bp * Dp + Cp * Dp + Bp * Cp) * dtype_bytes + 4 * Cp,
    )

    if kt == 1:
        # Fast path: no K grid axis, no scratch accumulator.
        grid_spec = pltpu.PrefetchScalarGridSpec(
            num_scalar_prefetch=0,
            grid=(Bp // tm, Cp // tn),
            in_specs=[
                pl.BlockSpec((tm, Dp), lambda i, j: (i, 0),
                             memory_space=pltpu.MemorySpace.VMEM),
                pl.BlockSpec((tn, Dp), lambda i, j: (j, 0),
                             memory_space=pltpu.MemorySpace.VMEM),
                pl.BlockSpec((1, tn), lambda i, j: (0, j),
                             memory_space=pltpu.MemorySpace.VMEM),
            ],
            out_specs=pl.BlockSpec((tm, tn), lambda i, j: (i, j),
                                   memory_space=pltpu.MemorySpace.VMEM),
        )
        kernel = _linear_kernel_nok
        dim_sem = ("parallel", "parallel")
    else:
        grid_spec = pltpu.PrefetchScalarGridSpec(
            num_scalar_prefetch=0,
            grid=(Bp // tm, Cp // tn, kt),
            in_specs=[
                pl.BlockSpec((tm, tk), lambda i, j, k: (i, k),
                             memory_space=pltpu.MemorySpace.VMEM),
                pl.BlockSpec((tn, tk), lambda i, j, k: (j, k),
                             memory_space=pltpu.MemorySpace.VMEM),
                pl.BlockSpec((1, tn), lambda i, j, k: (0, j),
                             memory_space=pltpu.MemorySpace.VMEM),
            ],
            out_specs=pl.BlockSpec((tm, tn), lambda i, j, k: (i, j),
                                   memory_space=pltpu.MemorySpace.VMEM),
            scratch_shapes=[pltpu.VMEM((tm, tn), jnp.float32)],
        )
        kernel = _linear_kernel_k
        dim_sem = ("parallel", "parallel", "arbitrary")

    out_p = pl.pallas_call(
        kernel,
        out_shape=jax.ShapeDtypeStruct((Bp, Cp), x.dtype),
        grid_spec=grid_spec,
        compiler_params=pltpu.CompilerParams(
            dimension_semantics=dim_sem,
            vmem_limit_bytes=32 * 1024 * 1024,
        ),
        cost_estimate=cost,
    )(x_p, w_p, b_row)

    # Slice the zero-padded rows/classes back off and restore leading dims.
    out = out_p[:B, :C]
    return out.reshape(*lead, C)


if __name__ == "__main__":
    key = jax.random.PRNGKey(0)

    # --- Small shapes consistent with LinearClassifier(in_dim=32, n_classes=16) ---
    B, in_dim, n_classes = 8, 32, 16
    kx, kw, kb = jax.random.split(key, 3)
    bound = 1.0 / (in_dim ** 0.5)  # nn.Linear default init range
    x = jax.random.normal(kx, (B, in_dim), dtype=jnp.float32)
    w = jax.random.uniform(kw, (n_classes, in_dim), minval=-bound, maxval=bound,
                           dtype=jnp.float32)
    b = jax.random.uniform(kb, (n_classes,), minval=-bound, maxval=bound,
                           dtype=jnp.float32)

    out = jax.block_until_ready(linear_classifier(x, w, b))
    ref = x @ w.T + b
    assert out.shape == (B, n_classes)
    assert jnp.allclose(out, ref, atol=1e-5, rtol=1e-5)

    # --- 3-D input to exercise leading-dim flattening (nn.Linear semantics) ---
    x3 = jax.random.normal(jax.random.PRNGKey(2), (2, 5, in_dim), dtype=jnp.float32)
    out3 = jax.block_until_ready(linear_classifier(x3, w, b))
    ref3 = jnp.einsum("bsd,cd->bsc", x3, w) + b
    assert out3.shape == (2, 5, n_classes)
    assert jnp.allclose(out3, ref3, atol=1e-5, rtol=1e-5)

    # --- Larger shape to exercise the (i, j, k) grid and K-reduction epilogue ---
    B2, D2_, C2 = 512, 1024, 256
    k2x, k2w, k2b = jax.random.split(jax.random.PRNGKey(1), 3)
    bound2 = 1.0 / (D2_ ** 0.5)
    x2 = jax.random.normal(k2x, (B2, D2_), dtype=jnp.float32)
    w2 = jax.random.uniform(k2w, (C2, D2_), minval=-bound2, maxval=bound2,
                            dtype=jnp.float32)
    b2 = jax.random.uniform(k2b, (C2,), minval=-bound2, maxval=bound2,
                            dtype=jnp.float32)

    out2 = jax.block_until_ready(linear_classifier(x2, w2, b2))
    ref2 = x2 @ w2.T + b2
    assert out2.shape == (B2, C2)
    assert jnp.allclose(out2, ref2, atol=1e-4, rtol=1e-4)

    # TODO(synk): for bf16 deployments, feed x/W as bf16 (f32 accumulation is
    # already in place) to double MXU throughput and halve W HBM traffic.
    print("KERNEL_OK")
</pallas_src>

<mosaic_0001>
module attributes {stable_mosaic.version = 11 : i64} {
  func.func @_linear_kernel_nok(%arg0: i32, %arg1: i32, %arg2: memref<8x128xf32, #tpu.memory_space<vmem>>, %arg3: memref<128x128xf32, #tpu.memory_space<vmem>>, %arg4: memref<1x128xf32, #tpu.memory_space<vmem>>, %arg5: memref<8x128xf32, #tpu.memory_space<vmem>>) attributes {dimension_semantics = [#tpu.dimension_semantics<parallel>, #tpu.dimension_semantics<parallel>], iteration_bounds = array<i64: 1, 1>, scalar_prefetch = 0 : i64, scratch_operands = 0 : i64, tpu.core_type = #tpu.core_type<tc>, window_params = [{transform_indices = @transform_0, window_bounds = array<i64: 8, 128>}, {transform_indices = @transform_1, window_bounds = array<i64: 128, 128>}, {transform_indices = @transform_2, window_bounds = array<i64: 1, 128>}, {transform_indices = @transform_3, window_bounds = array<i64: 8, 128>}]} {
    %c0 = arith.constant 0 : index
    %c0_0 = arith.constant 0 : index
    %0 = vector.load %arg2[%c0, %c0_0] : memref<8x128xf32, #tpu.memory_space<vmem>>, vector<8x128xf32>
    %c0_1 = arith.constant 0 : index
    %c0_2 = arith.constant 0 : index
    %1 = vector.load %arg3[%c0_1, %c0_2] : memref<128x128xf32, #tpu.memory_space<vmem>>, vector<128x128xf32>
    %cst = arith.constant dense<0.000000e+00> : vector<8x128xf32>
    %2 = tpu.matmul %0, %1, %cst {dimension_numbers = #tpu.dot_dimension_numbers<[1], [1], [0], [0], [0, 0, 1, 0], [], []>} : vector<8x128xf32>, vector<128x128xf32>, vector<8x128xf32> -> vector<8x128xf32>
    %c0_3 = arith.constant 0 : index
    %c0_4 = arith.constant 0 : index
    %3 = vector.load %arg4[%c0_3, %c0_4] : memref<1x128xf32, #tpu.memory_space<vmem>>, vector<1x128xf32>
    %4 = vector.broadcast %3 : vector<1x128xf32> to vector<8x128xf32>
    %5 = arith.addf %2, %4 : vector<8x128xf32>
    %c0_5 = arith.constant 0 : index
    %c0_6 = arith.constant 0 : index
    %6 = vector.load %arg5[%c0_5, %c0_6] : memref<8x128xf32, #tpu.memory_space<vmem>>, vector<8x128xf32>
    tpu.vector_store %arg5[%c0_5, %c0_6], %5 {strides = array<i32>} : memref<8x128xf32, #tpu.memory_space<vmem>>, vector<8x128xf32>,
    return
  }
  func.func @transform_0(%arg0: i32, %arg1: i32) -> (i32, i32) {
    %c0_i32 = arith.constant 0 : i32
    %c0_i32_0 = arith.constant 0 : i32
    return %arg0, %c0_i32 : i32, i32
  }
  func.func @transform_1(%arg0: i32, %arg1: i32) -> (i32, i32) {
    %c0_i32 = arith.constant 0 : i32
    %c0_i32_0 = arith.constant 0 : i32
    return %arg1, %c0_i32 : i32, i32
  }
  func.func @transform_2(%arg0: i32, %arg1: i32) -> (i32, i32) {
    %c0_i32 = arith.constant 0 : i32
    %c0_i32_0 = arith.constant 0 : i32
    return %c0_i32, %arg1 : i32, i32
  }
  func.func @transform_3(%arg0: i32, %arg1: i32) -> (i32, i32) {
    %c0_i32 = arith.constant 0 : i32
    return %arg0, %arg1 : i32, i32
  }
}

</mosaic_0001>

<llo_original>
// kernel: linear_classifier.1
$region0: #{linear_classifier.1}
  #allocation0 [shape = 'u32[]', space=smem, size = 0x4, offset = 0x4, fixed_abs, tag = 'smem constant byte address 0x4 - core index']
  #allocation1 [shape = 'u32[72,128]{1,0:T(1,128)}', space=vmem, size = 0x9000, scoped, tag = 'internal scratch']
  %s0 = inlined_call_operand.vmem [shape: f32[8,128], index: 0, kind: input, shape index: {}]
  %s1 = inlined_call_operand.vmem [shape: f32[128,128], index: 1, kind: input, shape index: {}]
  %s2 = inlined_call_operand.vmem [shape: f32[1,128], index: 2, kind: input, shape index: {}]
  %s3 = inlined_call_operand.hbm [shape: f32[8,128], index: 3, kind: output, shape index: {}]
  %s4 = sld [smem:[#allocation0]]
  $region22: #{linear_classifier.1} parent=0
    _
  %s6 = ssub.s32 1, %s4
  %s7 = scalar_select 0, %s6, %s4
  $region1: #{linear_classifier.1} parent=0
    #allocation2 [shape = 'u8[4096]{0}', space=vmem, size = 0x1000, scoped, tag = 'output window, operand 0, single buffered']
    #allocation3 [shape = 's32[1]{0}', space=sflag, size = 0x4, scoped, tag = 'scoped memory for linear_classifier.1']
    %8 = vsyncpa [#allocation3], 0
    // Predicated region
    $region2: #{linear_classifier.1} parent=1 // pred_check
      _
    $region3: #{linear_classifier.1} parent=1 // pred_check_branch
      %10 = sbr.rel (0) target = $region5
    $region4: #{linear_classifier.1} parent=1 // pred_region
      _
    $region5: #{linear_classifier.1} parent=1 // pred_fallthru
      _
    // Predicated region
    $region6: #{linear_classifier.1} parent=1 // pred_check
      _
    $region7: #{linear_classifier.1} parent=1 // pred_check_branch
      %12 = sbr.rel (0) target = $region9
    $region8: #{linear_classifier.1} parent=1 // pred_region
      _
    $region9: #{linear_classifier.1} parent=1 // pred_fallthru
      _
    // Predicated region
    $region10: #{linear_classifier.1} parent=1 // pred_check
      _
    $region11: #{linear_classifier.1} parent=1 // pred_check_branch
      %14 = sbr.rel (0) target = $region13
    $region12: #{linear_classifier.1} parent=1 // pred_region
      _
    $region13: #{linear_classifier.1} parent=1 // pred_fallthru
      _
    %v15 = vld [vmem:[%s0] sm:$0xff]
    %v16 = vld [vmem:[%s1] sm:$0xff]
    %v17 = vld [vmem:[%s1 + $0x8] sm:$0xff]
    %v18 = vld [vmem:[%s1 + $0x10] sm:$0xff]
    %v19 = vld [vmem:[%s1 + $0x18] sm:$0xff]
    %v20 = vld [vmem:[%s1 + $0x20] sm:$0xff]
    %v21 = vld [vmem:[%s1 + $0x28] sm:$0xff]
    %v22 = vld [vmem:[%s1 + $0x30] sm:$0xff]
    %v23 = vld [vmem:[%s1 + $0x38] sm:$0xff]
    %v24 = vld [vmem:[%s1 + $0x40] sm:$0xff]
    %v25 = vld [vmem:[%s1 + $0x48] sm:$0xff]
    %v26 = vld [vmem:[%s1 + $0x50] sm:$0xff]
    %v27 = vld [vmem:[%s1 + $0x58] sm:$0xff]
    %v28 = vld [vmem:[%s1 + $0x60] sm:$0xff]
    %v29 = vld [vmem:[%s1 + $0x68] sm:$0xff]
    %v30 = vld [vmem:[%s1 + $0x70] sm:$0xff]
    %v31 = vld [vmem:[%s1 + $0x78] sm:$0xff]
    %v32 = vld [vmem:[%s2] sm:$0x1]
    %v34 = vperm.slane %v32, 0
    %36 = vmatpush.xpose.msra.mxu0 %v31
    %37 = vmatpush.xpose.msra.mxu0 %v30
    %38 = vmatpush.xpose.msra.mxu0 %v29
    %39 = vmatpush.xpose.msra.mxu0 %v28
    %40 = vmatpush.xpose.msra.mxu0 %v27
    %41 = vmatpush.xpose.msra.mxu0 %v26
    %42 = vmatpush.xpose.msra.mxu0 %v25
    %43 = vmatpush.xpose.msra.mxu0 %v24
    %44 = vmatpush.xpose.msra.mxu0 %v23
    %45 = vmatpush.xpose.msra.mxu0 %v22
    %46 = vmatpush.xpose.msra.mxu0 %v21
    %47 = vmatpush.xpose.msra.mxu0 %v20
    %48 = vmatpush.xpose.msra.mxu0 %v19
    %49 = vmatpush.xpose.msra.mxu0 %v18
    %50 = vmatpush.xpose.msra.mxu0 %v17
    %51 = vmatpush.xpose.msra.mxu0 %v16
    %52 = vmatmul.f32.gmra.mxu0 %v15
    %v53 = vpop.f32.mrf.mxu0
    %v54 = vadd.f32 %v34, %v53
    %55 = vdwg.mxu0
    %56 = vst [vmem:[#allocation2] sm:$0xff] %v54
    // Predicated region
    $region14: #{linear_classifier.1} parent=1 // pred_check
      _
    $region15: #{linear_classifier.1} parent=1 // pred_check_branch
      %58 = sbr.rel (0) target = $region17
    $region16: #{linear_classifier.1} parent=1 // pred_region
      %60 = vsyncadd [#allocation3], 0
      %s62 = sshll.u32 [#allocation2], 4
      %s63 = int_to_ptr.vmem [resolvable:$true] %s62
      %s64 = sshll.u32 %s3, 4
      %s65 = int_to_ptr.hbm [resolvable:$true] %s64
      %67 = dma.vmem_to_hbm [thread:$0]  %s63, 128, %s65, [#allocation3]
    $region17: #{linear_classifier.1} parent=1 // pred_fallthru
      _
    // Predicated region
    $region18: #{linear_classifier.1} parent=1 // pred_check
      _
    $region19: #{linear_classifier.1} parent=1 // pred_check_branch
      %69 = sbr.rel (0) target = $region21
    $region20: #{linear_classifier.1} parent=1 // pred_region
      %71 = dma.done [#allocation3], 128
    $region21: #{linear_classifier.1} parent=1 // pred_fallthru
      _
    %72 = vsyncpa [#allocation3], 1

</llo_original>
